<compile_context>
chip_gen: v7x
topology: tpu7x:2x2x1
jax: 0.10.0
libtpu: 0.0.40
codegen_flags: <defaults>
</compile_context>

<pallas_src>
import math

import jax
import jax.numpy as jnp
from jax import lax
from jax.experimental import pallas as pl
from jax.experimental.pallas import tpu as pltpu

# --------------------------- problem configuration ---------------------------
B, C_IN, C_OUT = 2, 4, 8
H_X = W_X = 10
KH = KW = 3
SCALE = 2
H_C, W_C = H_X - KH + 1, W_X - KW + 1        # valid-conv output spatial (8, 8)
H_Y, W_Y = H_C * SCALE, W_C * SCALE          # upsampled / y spatial (16, 16)
BN_EPS = 1e-5

NPATCH = C_IN * KH * KW                      # 36
NCONV = B * H_C * W_C                        # 128  (lane dim of conv result)
NOUT = B * H_Y * W_Y                         # 512  (lane dim of state tensors)


def _bilinear_matrix(out_size: int, in_size: int) -> jnp.ndarray:
    """out = M @ in reproduces F.interpolate(mode='bilinear', align_corners=False)
    along one axis (static sizes -> static matrix; every row sums to 1)."""
    dst = jnp.arange(out_size, dtype=jnp.float32)
    src = (dst + 0.5) * (in_size / out_size) - 0.5
    src = jnp.maximum(src, 0.0)
    i0 = jnp.clip(jnp.floor(src).astype(jnp.int32), 0, in_size - 1)
    i1 = jnp.minimum(i0 + 1, in_size - 1)
    frac = src - i0.astype(jnp.float32)
    rows = jnp.arange(out_size)
    m = jnp.zeros((out_size, in_size), jnp.float32)
    m = m.at[rows, i0].add(1.0 - frac)
    m = m.at[rows, i1].add(frac)
    return m


# --------------------------------- kernel ------------------------------------
def _c_br_kernel(scal_ref,                       # SMEM (2,): [delta, weight_y]
                 w_ref,                          # (C_OUT, 36)   conv weights * weight_x
                 kbd_ref,                        # (128, 512)    block-diag upsample matrix
                 patches_ref,                    # (36, 128)     im2col of x
                 y_ref, ypl_ref,                 # (C_OUT, 512)  lane-dense state
                 gamma_ref, beta_ref,            # (C_OUT, 1)    BN affine
                 ynext_ref, yleft_ref):          # (C_OUT, 512)  outputs
    delta = scal_ref[0]
    w_y = scal_ref[1]

    # -- valid 3x3 conv of (weight_x*x) as one MXU matmul: (8,36)@(36,128)->(8,128)
    #    (conv bias omitted: a per-channel constant cancels exactly against the
    #     training-mode BatchNorm mean subtraction.)
    conv = jnp.dot(w_ref[...], patches_ref[...], preferred_element_type=jnp.float32)

    # -- fused bilinear upsample (both axes + batch) as one matmul:
    #    (8,128) @ (128,512) -> (8,512), already in the lane-dense output layout.
    up = jnp.dot(conv, kbd_ref[...], preferred_element_type=jnp.float32)

    # -- sigma = ReLU(BatchNorm2d(weight_y*y + up)), training-mode batch stats ----
    yw = w_y * y_ref[...]                       # (8, 512)
    pre = yw + up

    inv_n = 1.0 / float(NOUT)                   # stats over (N, H, W) per channel
    s1 = jnp.sum(pre, axis=1, keepdims=True)            # (8, 1)
    s2 = jnp.sum(pre * pre, axis=1, keepdims=True)      # (8, 1)  one-pass stats
    mean = s1 * inv_n
    var = s2 * inv_n - mean * mean                       # biased variance
    scale = gamma_ref[...] * lax.rsqrt(var + BN_EPS)     # (8, 1), rsqrt on EUP
    sig = jnp.maximum((pre - mean) * scale + beta_ref[...], 0.0)

    # -- nmODE update --------------------------------------------------------
    y_left = delta * (yw + sig)                           # = d*w_y*y + d*sigma
    yleft_ref[...] = y_left
    ynext_ref[...] = y_ref[...] - 1.5 * y_left + 0.5 * ypl_ref[...]


# ------------------------------- host wrapper --------------------------------
def _c_br_forward_impl(x, y, y_pre_left, delta, weight_x, weight_y,
                       conv_w, gamma, beta):
    # ---- host-side layout plumbing (tiny XLA ops; no kernel compute moved) ----
    # fold weight_x into conv weights
    w_flat = (conv_w * weight_x).reshape(C_OUT, NPATCH)               # (8, 36)

    # im2col: patches_t[ci*9+kh*3+kw, b*64+h*8+w] = x[b, ci, h+kh, w+kw]
    taps = [x[:, :, kh:kh + H_C, kw:kw + W_C]
            for kh in range(KH) for kw in range(KW)]
    patches = jnp.stack(taps, axis=2).reshape(B, NPATCH, H_C * W_C)   # (B, 36, 64)
    patches_t = patches.transpose(1, 0, 2).reshape(NPATCH, NCONV)     # (36, 128)

    # fused bilinear-upsample matrix, block-diagonal over batch:
    #   kbd[b*64 + h*8 + w, b*256 + oh*16 + ow] = Mh[oh, h] * Mw[ow, w]
    mh = _bilinear_matrix(H_Y, H_C)                                   # (16, 8)
    mw = _bilinear_matrix(W_Y, W_C)                                   # (16, 8)
    k = jnp.kron(mh.T, mw.T)                                          # (64, 256)
    kbd = jnp.kron(jnp.eye(B, dtype=jnp.float32), k)                  # (128, 512)

    # lane-dense (C_OUT, B*H_Y*W_Y) views of the state tensors
    y_l = y.transpose(1, 0, 2, 3).reshape(C_OUT, NOUT)
    ypl_l = y_pre_left.transpose(1, 0, 2, 3).reshape(C_OUT, NOUT)

    scal = jnp.stack([jnp.float32(delta), jnp.float32(weight_y)])
    gamma2 = gamma.reshape(C_OUT, 1)
    beta2 = beta.reshape(C_OUT, 1)

    vmem = pl.BlockSpec(memory_space=pltpu.MemorySpace.VMEM)
    smem = pl.BlockSpec(memory_space=pltpu.MemorySpace.SMEM)

    # single kernel invocation (no grid): whole working set < 1 MiB of VMEM.
    y_next_l, y_left_l = pl.pallas_call(
        _c_br_kernel,
        out_shape=(jax.ShapeDtypeStruct((C_OUT, NOUT), jnp.float32),
                   jax.ShapeDtypeStruct((C_OUT, NOUT), jnp.float32)),
        in_specs=[smem, vmem, vmem, vmem, vmem, vmem, vmem, vmem],
        out_specs=(vmem, vmem),
    )(scal, w_flat, kbd, patches_t, y_l, ypl_l, gamma2, beta2)

    # back to NCHW
    y_next = y_next_l.reshape(C_OUT, B, H_Y, W_Y).transpose(1, 0, 2, 3)
    y_left = y_left_l.reshape(C_OUT, B, H_Y, W_Y).transpose(1, 0, 2, 3)
    return y_next, y_left


c_br_forward = jax.jit(_c_br_forward_impl)


# ------------------------------ pure-JAX reference ----------------------------
def c_br_reference(x, y, y_pre_left, delta, weight_x, weight_y,
                   conv_w, conv_b, gamma, beta):
    mh = _bilinear_matrix(H_Y, H_C)
    mw = _bilinear_matrix(W_Y, W_C)
    xw = weight_x * x
    conv = lax.conv_general_dilated(xw, conv_w, window_strides=(1, 1),
                                    padding="VALID",
                                    dimension_numbers=("NCHW", "OIHW", "NCHW"))
    conv = conv + conv_b[None, :, None, None]
    up = jnp.einsum("oh,bchw,pw->bcop", mh, conv, mw)
    yw = weight_y * y
    pre = yw + up
    mean = pre.mean(axis=(0, 2, 3), keepdims=True)
    var = ((pre - mean) ** 2).mean(axis=(0, 2, 3), keepdims=True)
    sig = jnp.maximum((pre - mean) / jnp.sqrt(var + BN_EPS)
                      * gamma[None, :, None, None] + beta[None, :, None, None], 0.0)
    y_left = delta * yw + delta * sig
    y_next = y - 1.5 * y_left + 0.5 * y_pre_left
    return y_next, y_left


if __name__ == "__main__":
    key = jax.random.PRNGKey(0)
    kw_, kb_, kx, ky, kp = jax.random.split(key, 5)

    # deterministic parameter init (Conv2d default-ish uniform; BN gamma=1, beta=0)
    fan_in = C_IN * KH * KW
    bound = 1.0 / math.sqrt(fan_in)
    conv_w = jax.random.uniform(kw_, (C_OUT, C_IN, KH, KW), jnp.float32, -bound, bound)
    conv_b = jax.random.uniform(kb_, (C_OUT,), jnp.float32, -bound, bound)
    gamma = jnp.ones((C_OUT,), jnp.float32)
    beta = jnp.zeros((C_OUT,), jnp.float32)

    # inputs
    x = jax.random.normal(kx, (B, C_IN, H_X, W_X), jnp.float32)
    y = jax.random.normal(ky, (B, C_OUT, H_Y, W_Y), jnp.float32)
    y_pre_left = jax.random.normal(kp, (B, C_OUT, H_Y, W_Y), jnp.float32)
    delta, weight_x, weight_y = 0.1, 0.7, 1.3

    # NOTE: the conv bias is passed only to the reference; inside the kernel it is
    # dropped because it cancels exactly under training-mode BatchNorm.
    y_next, y_left = c_br_forward(x, y, y_pre_left, delta, weight_x, weight_y,
                                  conv_w, gamma, beta)
    jax.block_until_ready((y_next, y_left))

    ref_next, ref_left = c_br_reference(x, y, y_pre_left, delta, weight_x, weight_y,
                                        conv_w, conv_b, gamma, beta)
    assert jnp.allclose(y_next, ref_next, rtol=2e-3, atol=2e-3)
    assert jnp.allclose(y_left, ref_left, rtol=2e-3, atol=2e-3)
    print("KERNEL_OK")
</pallas_src>

<mosaic_0001>
module attributes {stable_mosaic.version = 11 : i64} {
  func.func private @main(%arg0: i32) attributes {dimension_semantics = [#tpu.dimension_semantics<core_parallel>], iteration_bounds = array<i64: 2>, tpu.core_type = #tpu.core_type<sc_scalar_subcore>, window_params = []} {
    return
  }
}

module attributes {stable_mosaic.version = 11 : i64} {
  func.func private @main(%arg0: i32) attributes {dimension_semantics = [#tpu.dimension_semantics<core_parallel>], iteration_bounds = array<i64: 2>, tpu.core_type = #tpu.core_type<sc_scalar_subcore>, window_params = []} {
    return
  }
}

module attributes {stable_mosaic.version = 11 : i64} {
  func.func @_c_br_kernel(%arg0: memref<2xf32, #tpu.memory_space<smem>>, %arg1: memref<8x36xf32, #tpu.memory_space<vmem>>, %arg2: memref<128x512xf32, #tpu.memory_space<vmem>>, %arg3: memref<36x128xf32, #tpu.memory_space<vmem>>, %arg4: memref<8x512xf32, #tpu.memory_space<vmem>>, %arg5: memref<8x512xf32, #tpu.memory_space<vmem>>, %arg6: memref<8x1xf32, #tpu.memory_space<vmem>>, %arg7: memref<8x1xf32, #tpu.memory_space<vmem>>, %arg8: memref<8x512xf32, #tpu.memory_space<vmem>>, %arg9: memref<8x512xf32, #tpu.memory_space<vmem>>) attributes {dimension_semantics = [], scalar_prefetch = 0 : i64, scratch_operands = 0 : i64, tpu.core_type = #tpu.core_type<tc>} {
    %c0 = arith.constant 0 : index
    %0 = memref.load %arg0[%c0] : memref<2xf32, #tpu.memory_space<smem>>
    %c1 = arith.constant 1 : index
    %1 = memref.load %arg0[%c1] : memref<2xf32, #tpu.memory_space<smem>>
    %c0_0 = arith.constant 0 : index
    %c0_1 = arith.constant 0 : index
    %2 = vector.load %arg1[%c0_0, %c0_1] : memref<8x36xf32, #tpu.memory_space<vmem>>, vector<8x36xf32>
    %c0_2 = arith.constant 0 : index
    %c0_3 = arith.constant 0 : index
    %3 = vector.load %arg3[%c0_2, %c0_3] : memref<36x128xf32, #tpu.memory_space<vmem>>, vector<36x128xf32>
    %cst = arith.constant dense<0.000000e+00> : vector<8x128xf32>
    %4 = tpu.matmul %2, %3, %cst {dimension_numbers = #tpu.dot_dimension_numbers<[1], [0], [0], [1], [0, 0, 1, 1], [], []>} : vector<8x36xf32>, vector<36x128xf32>, vector<8x128xf32> -> vector<8x128xf32>
    %c0_4 = arith.constant 0 : index
    %c0_5 = arith.constant 0 : index
    %5 = vector.load %arg2[%c0_4, %c0_5] : memref<128x512xf32, #tpu.memory_space<vmem>>, vector<128x512xf32>
    %cst_6 = arith.constant dense<0.000000e+00> : vector<8x512xf32>
    %6 = tpu.matmul %4, %5, %cst_6 {dimension_numbers = #tpu.dot_dimension_numbers<[1], [0], [0], [1], [0, 0, 1, 1], [], []>} : vector<8x128xf32>, vector<128x512xf32>, vector<8x512xf32> -> vector<8x512xf32>
    %c0_7 = arith.constant 0 : index
    %c0_8 = arith.constant 0 : index
    %7 = vector.load %arg4[%c0_7, %c0_8] : memref<8x512xf32, #tpu.memory_space<vmem>>, vector<8x512xf32>
    %8 = vector.broadcast %1 : f32 to vector<8x512xf32>
    %9 = arith.mulf %8, %7 : vector<8x512xf32>
    %10 = arith.addf %9, %6 : vector<8x512xf32>
    %cst_9 = arith.constant dense<0.000000e+00> : vector<8xf32>
    %11 = vector.multi_reduction <add>, %10, %cst_9 [1] : vector<8x512xf32> to vector<8xf32>
    %12 = vector.shape_cast %11 : vector<8xf32> to vector<8x1xf32>
    %13 = arith.mulf %10, %10 : vector<8x512xf32>
    %cst_10 = arith.constant dense<0.000000e+00> : vector<8xf32>
    %14 = vector.multi_reduction <add>, %13, %cst_10 [1] : vector<8x512xf32> to vector<8xf32>
    %15 = vector.shape_cast %14 : vector<8xf32> to vector<8x1xf32>
    %cst_11 = arith.constant 0.001953125 : f32
    %16 = vector.broadcast %cst_11 : f32 to vector<8x1xf32>
    %17 = arith.mulf %12, %16 : vector<8x1xf32>
    %cst_12 = arith.constant 0.001953125 : f32
    %18 = vector.broadcast %cst_12 : f32 to vector<8x1xf32>
    %19 = arith.mulf %15, %18 : vector<8x1xf32>
    %20 = arith.mulf %17, %17 : vector<8x1xf32>
    %21 = arith.subf %19, %20 : vector<8x1xf32>
    %c0_13 = arith.constant 0 : index
    %c0_14 = arith.constant 0 : index
    %22 = vector.load %arg6[%c0_13, %c0_14] : memref<8x1xf32, #tpu.memory_space<vmem>>, vector<8x1xf32>
    %cst_15 = arith.constant 9.99999974E-6 : f32
    %23 = vector.broadcast %cst_15 : f32 to vector<8x1xf32>
    %24 = arith.addf %21, %23 : vector<8x1xf32>
    %25 = math.rsqrt %24 : vector<8x1xf32>
    %26 = arith.mulf %22, %25 : vector<8x1xf32>
    %27 = vector.broadcast %17 : vector<8x1xf32> to vector<8x512xf32>
    %28 = arith.subf %10, %27 : vector<8x512xf32>
    %29 = vector.broadcast %26 : vector<8x1xf32> to vector<8x512xf32>
    %30 = arith.mulf %28, %29 : vector<8x512xf32>
    %c0_16 = arith.constant 0 : index
    %c0_17 = arith.constant 0 : index
    %31 = vector.load %arg7[%c0_16, %c0_17] : memref<8x1xf32, #tpu.memory_space<vmem>>, vector<8x1xf32>
    %32 = vector.broadcast %31 : vector<8x1xf32> to vector<8x512xf32>
    %33 = arith.addf %30, %32 : vector<8x512xf32>
    %cst_18 = arith.constant 0.000000e+00 : f32
    %34 = vector.broadcast %cst_18 : f32 to vector<8x512xf32>
    %35 = arith.maximumf %33, %34 : vector<8x512xf32>
    %36 = arith.addf %9, %35 : vector<8x512xf32>
    %37 = vector.broadcast %0 : f32 to vector<8x512xf32>
    %38 = arith.mulf %37, %36 : vector<8x512xf32>
    %c0_19 = arith.constant 0 : index
    %c0_20 = arith.constant 0 : index
    %39 = vector.load %arg9[%c0_19, %c0_20] : memref<8x512xf32, #tpu.memory_space<vmem>>, vector<8x512xf32>
    tpu.vector_store %arg9[%c0_19, %c0_20], %38 {strides = array<i32>} : memref<8x512xf32, #tpu.memory_space<vmem>>, vector<8x512xf32>,
    %c0_21 = arith.constant 0 : index
    %c0_22 = arith.constant 0 : index
    %40 = vector.load %arg4[%c0_21, %c0_22] : memref<8x512xf32, #tpu.memory_space<vmem>>, vector<8x512xf32>
    %cst_23 = arith.constant 1.500000e+00 : f32
    %41 = vector.broadcast %cst_23 : f32 to vector<8x512xf32>
    %42 = arith.mulf %41, %38 : vector<8x512xf32>
    %43 = arith.subf %40, %42 : vector<8x512xf32>
    %c0_24 = arith.constant 0 : index
    %c0_25 = arith.constant 0 : index
    %44 = vector.load %arg5[%c0_24, %c0_25] : memref<8x512xf32, #tpu.memory_space<vmem>>, vector<8x512xf32>
    %cst_26 = arith.constant 5.000000e-01 : f32
    %45 = vector.broadcast %cst_26 : f32 to vector<8x512xf32>
    %46 = arith.mulf %45, %44 : vector<8x512xf32>
    %47 = arith.addf %43, %46 : vector<8x512xf32>
    %c0_27 = arith.constant 0 : index
    %c0_28 = arith.constant 0 : index
    %48 = vector.load %arg8[%c0_27, %c0_28] : memref<8x512xf32, #tpu.memory_space<vmem>>, vector<8x512xf32>
    tpu.vector_store %arg8[%c0_27, %c0_28], %47 {strides = array<i32>} : memref<8x512xf32, #tpu.memory_space<vmem>>, vector<8x512xf32>,
    return
  }
}

</mosaic_0001>

<llo_original>
// kernel: _c_br_forward_impl.1
$region0: #{_c_br_forward_impl.1}
  #allocation0 [shape = 'u32[]', space=smem, size = 0x4, offset = 0x4, fixed_abs, tag = 'smem constant byte address 0x4 - core index']
  #allocation1 [shape = 'u32[144,128]{1,0:T(1,128)}', space=vmem, size = 0x12000, scoped, tag = 'internal scratch']
  %s0 = inlined_call_operand.vmem [shape: f32[2], index: 0, kind: input, shape index: {}]
  %s1 = inlined_call_operand.vmem [shape: f32[8,36], index: 1, kind: input, shape index: {}]
  %s2 = inlined_call_operand.vmem [shape: f32[128,512], index: 2, kind: input, shape index: {}]
  %s3 = inlined_call_operand.vmem [shape: f32[36,128], index: 3, kind: input, shape index: {}]
  %s4 = inlined_call_operand.vmem [shape: f32[8,512], index: 4, kind: input, shape index: {}]
  %s5 = inlined_call_operand.vmem [shape: f32[8,512], index: 5, kind: input, shape index: {}]
  %s6 = inlined_call_operand.vmem [shape: f32[8,1], index: 6, kind: input, shape index: {}]
  %s7 = inlined_call_operand.vmem [shape: f32[8,1], index: 7, kind: input, shape index: {}]
  %s8 = inlined_call_operand.vmem [shape: f32[8,512], index: 8, kind: output, shape index: {0}]
  %s9 = inlined_call_operand.vmem [shape: f32[8,512], index: 9, kind: output, shape index: {1}]
  %10 = xla_tuple %s8, %s9
  %s11 = sld [smem:[#allocation0]]
  $region54: #{_c_br_forward_impl.1} parent=0
    _
  %s13 = ssub.s32 1, %s11
  %s14 = scalar_select 0, %s13, %s11
  $region1: #{_c_br_forward_impl.1} parent=0
    #allocation2 [shape = 'u8[512]{0}', space=smem, size = 0x200, scoped, tag = 'input window, operand 0, single buffered']
    #allocation3 [shape = 's32[1]{0}', space=sflag, size = 0x4, scoped, tag = 'scoped memory for _c_br_forward_impl.1']
    %15 = vsyncpa [#allocation3], 0
    // Predicated region
    $region2: #{_c_br_forward_impl.1} parent=1 // pred_check
      _
    $region3: #{_c_br_forward_impl.1} parent=1 // pred_check_branch
      %17 = sbr.rel (0) target = $region5
    $region4: #{_c_br_forward_impl.1} parent=1 // pred_region
      %s19 = ssub.s32 16, 16
      %20 = vsyncadd [#allocation3], %s19
      %s22 = sshll.u32 %s0, 4
      %s23 = int_to_ptr.vmem [resolvable:$true] %s22
      %25 = dma.vmem_to_smem %s23, 16, [#allocation2], [#allocation3]
    $region5: #{_c_br_forward_impl.1} parent=1 // pred_fallthru
      _
    // Predicated region
    $region6: #{_c_br_forward_impl.1} parent=1 // pred_check
      _
    $region7: #{_c_br_forward_impl.1} parent=1 // pred_check_branch
      %27 = sbr.rel (0) target = $region9
    $region8: #{_c_br_forward_impl.1} parent=1 // pred_region
      _
    $region9: #{_c_br_forward_impl.1} parent=1 // pred_fallthru
      _
    // Predicated region
    $region10: #{_c_br_forward_impl.1} parent=1 // pred_check
      _
    $region11: #{_c_br_forward_impl.1} parent=1 // pred_check_branch
      %29 = sbr.rel (0) target = $region13
    $region12: #{_c_br_forward_impl.1} parent=1 // pred_region
      _
    $region13: #{_c_br_forward_impl.1} parent=1 // pred_fallthru
      _
    // Predicated region
    $region14: #{_c_br_forward_impl.1} parent=1 // pred_check
      _
    $region15: #{_c_br_forward_impl.1} parent=1 // pred_check_branch
      %31 = sbr.rel (0) target = $region17
    $region16: #{_c_br_forward_impl.1} parent=1 // pred_region
      _
    $region17: #{_c_br_forward_impl.1} parent=1 // pred_fallthru
      _
    // Predicated region
    $region18: #{_c_br_forward_impl.1} parent=1 // pred_check
      _
    $region19: #{_c_br_forward_impl.1} parent=1 // pred_check_branch
      %33 = sbr.rel (0) target = $region21
    $region20: #{_c_br_forward_impl.1} parent=1 // pred_region
      _
    $region21: #{_c_br_forward_impl.1} parent=1 // pred_fallthru
      _
    // Predicated region
    $region22: #{_c_br_forward_impl.1} parent=1 // pred_check
      _
    $region23: #{_c_br_forward_impl.1} parent=1 // pred_check_branch
      %35 = sbr.rel (0) target = $region25
    $region24: #{_c_br_forward_impl.1} parent=1 // pred_region
      _
    $region25: #{_c_br_forward_impl.1} parent=1 // pred_fallthru
      _
    // Predicated region
    $region26: #{_c_br_forward_impl.1} parent=1 // pred_check
      _
    $region27: #{_c_br_forward_impl.1} parent=1 // pred_check_branch
      %37 = sbr.rel (0) target = $region29
    $region28: #{_c_br_forward_impl.1} parent=1 // pred_region
      _
    $region29: #{_c_br_forward_impl.1} parent=1 // pred_fallthru
      _
    // Predicated region
    $region30: #{_c_br_forward_impl.1} parent=1 // pred_check
      _
    $region31: #{_c_br_forward_impl.1} parent=1 // pred_check_branch
      %39 = sbr.rel (0) target = $region33
    $region32: #{_c_br_forward_impl.1} parent=1 // pred_region
      _
    $region33: #{_c_br_forward_impl.1} parent=1 // pred_fallthru
      _
    // Predicated region
    $region34: #{_c_br_forward_impl.1} parent=1 // pred_check
      _
    $region35: #{_c_br_forward_impl.1} parent=1 // pred_check_branch
      %41 = sbr.rel (0) target = $region37
    $region36: #{_c_br_forward_impl.1} parent=1 // pred_region
      %42 = dma.done [#allocation3], 16
    $region37: #{_c_br_forward_impl.1} parent=1 // pred_fallthru
      _
    %43 = sfence
    %s44 = sld [smem:[#allocation2]]
    %s45 = sld [smem:[#allocation2 + $0x1]]
    %v46 = vld [vmem:[%s1] sm:$0xff]
    %v47 = vld [vmem:[%s3] sm:$0xff]
    %v48 = vld [vmem:[%s3 + $0x8] sm:$0xff]
    %v49 = vld [vmem:[%s3 + $0x10] sm:$0xff]
    %v50 = vld [vmem:[%s3 + $0x18] sm:$0xff]
    %v51 = vld [vmem:[%s3 + $0x20] sm:$0xf]
    %vm52 = vcmask 293888
    %v54 = vsel %vm52, %v46, 0
    %vm56 = vcmask 1043456
    %v58 = vsel %vm56, %v51, 0
    %60 = vmatprep.subr.mxu0 0.0
    %61 = vmatpush1.msra.mxu0 %v47
    %62 = vmatprep.subr.mxu0 0.0
    %63 = vmatpush1.msra.mxu0 %v48
    %64 = vmatprep.subr.mxu0 0.0
    %65 = vmatpush1.msra.mxu0 %v49
    %66 = vmatprep.subr.mxu0 0.0
    %67 = vmatpush1.msra.mxu0 %v50
    %68 = vmatprep.subr.mxu0 0.0
    %69 = vmatpush1.msra.mxu0 %v58
    %70 = vmatprep.subr.mxu0 0.0
    %71 = vmatpush1.msra.mxu0 0.0
    %72 = vmatprep.subr.mxu0 0.0
    %73 = vmatpush1.msra.mxu0 0.0
    %74 = vmatprep.subr.mxu0 0.0
    %75 = vmatpush1.msra.mxu0 0.0
    %76 = vmatprep.subr.mxu0 0.0
    %77 = vmatpush1.msra.mxu0 0.0
    %78 = vmatprep.subr.mxu0 0.0
    %79 = vmatpush1.msra.mxu0 0.0
    %80 = vmatprep.subr.mxu0 0.0
    %81 = vmatpush1.msra.mxu0 0.0
    %82 = vmatprep.subr.mxu0 0.0
    %83 = vmatpush1.msra.mxu0 0.0
    %84 = vmatprep.subr.mxu0 0.0
    %85 = vmatpush1.msra.mxu0 0.0
    %86 = vmatprep.subr.mxu0 0.0
    %87 = vmatpush1.msra.mxu0 0.0
    %88 = vmatprep.subr.mxu0 0.0
    %89 = vmatpush1.msra.mxu0 0.0
    %90 = vmatprep.subr.mxu0 0.0
    %91 = vmatpush1.msra.mxu0 0.0
    %92 = vmatprep.subr.mxu0 0.0
    %93 = vmatpush1.msra.mxu0 0.0
    %94 = vmatprep.subr.mxu0 0.0
    %95 = vmatpush1.msra.mxu0 0.0
    %96 = vmatprep.subr.mxu0 0.0
    %97 = vmatpush1.msra.mxu0 0.0
    %98 = vmatprep.subr.mxu0 0.0
    %99 = vmatpush1.msra.mxu0 0.0
    %100 = vmatprep.subr.mxu0 0.0
    %101 = vmatpush1.msra.mxu0 0.0
    %102 = vmatprep.subr.mxu0 0.0
    %103 = vmatpush1.msra.mxu0 0.0
    %104 = vmatprep.subr.mxu0 0.0
    %105 = vmatpush1.msra.mxu0 0.0
    %106 = vmatprep.subr.mxu0 0.0
    %107 = vmatpush1.msra.mxu0 0.0
    %108 = vmatprep.subr.mxu0 0.0
    %109 = vmatpush1.msra.mxu0 0.0
    %110 = vmatprep.subr.mxu0 0.0
    %111 = vmatpush1.msra.mxu0 0.0
    %112 = vmatprep.subr.mxu0 0.0
    %113 = vmatpush1.msra.mxu0 0.0
    %114 = vmatprep.subr.mxu0 0.0
    %115 = vmatpush1.msra.mxu0 0.0
    %116 = vmatprep.subr.mxu0 0.0
    %117 = vmatpush1.msra.mxu0 0.0
    %118 = vmatprep.subr.mxu0 0.0
    %119 = vmatpush1.msra.mxu0 0.0
    %120 = vmatprep.subr.mxu0 0.0
    %121 = vmatpush1.msra.mxu0 0.0
    %122 = vmatprep.subr.mxu0 0.0
    %123 = vmatpush1.msra.mxu0 0.0
    %124 = vmatprep.mubr.f32.mxu0 0.0
    %125 = vmatmul.mubr.f32.gmra.mrb[0].mxu0 %v54
    %v126 = vpop.f32.mrb[0].mxu0
    %v127 = vadd.f32 0.0, %v126
    %v128 = vpop.f32.mrb[0].mxu0
    %129 = vdwg.mxu0
    %v130 = vld [vmem:[%s2] sm:$0xff]
    %v131 = vld [vmem:[%s2 + $0x8] sm:$0xff]
    %v132 = vld [vmem:[%s2 + $0x10] sm:$0xff]
    %v133 = vld [vmem:[%s2 + $0x18] sm:$0xff]
    %v134 = vld [vmem:[%s2 + $0x20] sm:$0xff]
    %v135 = vld [vmem:[%s2 + $0x28] sm:$0xff]
    %v136 = vld [vmem:[%s2 + $0x30] sm:$0xff]
    %v137 = vld [vmem:[%s2 + $0x38] sm:$0xff]
    %v138 = vld [vmem:[%s2 + $0x40] sm:$0xff]
    %v139 = vld [vmem:[%s2 + $0x48] sm:$0xff]
    %v140 = vld [vmem:[%s2 + $0x50] sm:$0xff]
    %v141 = vld [vmem:[%s2 + $0x58] sm:$0xff]
    %v142 = vld [vmem:[%s2 + $0x60] sm:$0xff]
    %v143 = vld [vmem:[%s2 + $0x68] sm:$0xff]
    %v144 = vld [vmem:[%s2 + $0x70] sm:$0xff]
    %v145 = vld [vmem:[%s2 + $0x78] sm:$0xff]
    %v146 = vld [vmem:[%s2 + $0x80] sm:$0xff]
    %v147 = vld [vmem:[%s2 + $0x88] sm:$0xff]
    %v148 = vld [vmem:[%s2 + $0x90] sm:$0xff]
    %v149 = vld [vmem:[%s2 + $0x98] sm:$0xff]
    %v150 = vld [vmem:[%s2 + $0xa0] sm:$0xff]
    %v151 = vld [vmem:[%s2 + $0xa8] sm:$0xff]
    %v152 = vld [vmem:[%s2 + $0xb0] sm:$0xff]
    %v153 = vld [vmem:[%s2 + $0xb8] sm:$0xff]
    %v154 = vld [vmem:[%s2 + $0xc0] sm:$0xff]
    %v155 = vld [vmem:[%s2 + $0xc8] sm:$0xff]
    %v156 = vld [vmem:[%s2 + $0xd0] sm:$0xff]
    %v157 = vld [vmem:[%s2 + $0xd8] sm:$0xff]
    %v158 = vld [vmem:[%s2 + $0xe0] sm:$0xff]
    %v159 = vld [vmem:[%s2 + $0xe8] sm:$0xff]
    %v160 = vld [vmem:[%s2 + $0xf0] sm:$0xff]
    %v161 = vld [vmem:[%s2 + $0xf8] sm:$0xff]
    %v162 = vld [vmem:[%s2 + $0x100] sm:$0xff]
    %v163 = vld [vmem:[%s2 + $0x108] sm:$0xff]
    %v164 = vld [vmem:[%s2 + $0x110] sm:$0xff]
    %v165 = vld [vmem:[%s2 + $0x118] sm:$0xff]
    %v166 = vld [vmem:[%s2 + $0x120] sm:$0xff]
    %v167 = vld [vmem:[%s2 + $0x128] sm:$0xff]
    %v168 = vld [vmem:[%s2 + $0x130] sm:$0xff]
    %v169 = vld [vmem:[%s2 + $0x138] sm:$0xff]
    %v170 = vld [vmem:[%s2 + $0x140] sm:$0xff]
    %v171 = vld [vmem:[%s2 + $0x148] sm:$0xff]
    %v172 = vld [vmem:[%s2 + $0x150] sm:$0xff]
    %v173 = vld [vmem:[%s2 + $0x158] sm:$0xff]
    %v174 = vld [vmem:[%s2 + $0x160] sm:$0xff]
    %v175 = vld [vmem:[%s2 + $0x168] sm:$0xff]
    %v176 = vld [vmem:[%s2 + $0x170] sm:$0xff]
    %v177 = vld [vmem:[%s2 + $0x178] sm:$0xff]
    %v178 = vld [vmem:[%s2 + $0x180] sm:$0xff]
    %v179 = vld [vmem:[%s2 + $0x188] sm:$0xff]
    %v180 = vld [vmem:[%s2 + $0x190] sm:$0xff]
    %v181 = vld [vmem:[%s2 + $0x198] sm:$0xff]
    %v182 = vld [vmem:[%s2 + $0x1a0] sm:$0xff]
    %v183 = vld [vmem:[%s2 + $0x1a8] sm:$0xff]
    %v184 = vld [vmem:[%s2 + $0x1b0] sm:$0xff]
    %v185 = vld [vmem:[%s2 + $0x1b8] sm:$0xff]
    %v186 = vld [vmem:[%s2 + $0x1c0] sm:$0xff]
    %v187 = vld [vmem:[%s2 + $0x1c8] sm:$0xff]
    %v188 = vld [vmem:[%s2 + $0x1d0] sm:$0xff]
    %v189 = vld [vmem:[%s2 + $0x1d8] sm:$0xff]
    %v190 = vld [vmem:[%s2 + $0x1e0] sm:$0xff]
    %v191 = vld [vmem:[%s2 + $0x1e8] sm:$0xff]
    %v192 = vld [vmem:[%s2 + $0x1f0] sm:$0xff]
    %v193 = vld [vmem:[%s2 + $0x1f8] sm:$0xff]
    %194 = vmatprep.subr.mxu0 %v131
    %195 = vmatpush1.msra.mxu0 %v130
    %196 = vmatprep.subr.mxu0 %v135
    %197 = vmatpush1.msra.mxu0 %v134
    %198 = vmatprep.subr.mxu0 %v139
    %199 = vmatpush1.msra.mxu0 %v138
    %200 = vmatprep.subr.mxu0 %v143
    %201 = vmatpush1.msra.mxu0 %v142
    %202 = vmatprep.subr.mxu0 %v147
    %203 = vmatpush1.msra.mxu0 %v146
    %204 = vmatprep.subr.mxu0 %v151
    %205 = vmatpush1.msra.mxu0 %v150
    %206 = vmatprep.subr.mxu0 %v155
    %207 = vmatpush1.msra.mxu0 %v154
    %208 = vmatprep.subr.mxu0 %v159
    %209 = vmatpush1.msra.mxu0 %v158
    %210 = vmatprep.subr.mxu0 %v163
    %211 = vmatpush1.msra.mxu0 %v162
    %212 = vmatprep.subr.mxu0 %v167
    %213 = vmatpush1.msra.mxu0 %v166
    %214 = vmatprep.subr.mxu0 %v171
    %215 = vmatpush1.msra.mxu0 %v170
    %216 = vmatprep.subr.mxu0 %v175
    %217 = vmatpush1.msra.mxu0 %v174
    %218 = vmatprep.subr.mxu0 %v179
    %219 = vmatpush1.msra.mxu0 %v178
    %220 = vmatprep.subr.mxu0 %v183
    %221 = vmatpush1.msra.mxu0 %v182
    %222 = vmatprep.subr.mxu0 %v187
    %223 = vmatpush1.msra.mxu0 %v186
    %224 = vmatprep.subr.mxu0 %v191
    %225 = vmatpush1.msra.mxu0 %v190
    %226 = vmatprep.subr.mxu0 0.0
    %227 = vmatpush1.msra.mxu0 0.0
    %228 = vmatprep.subr.mxu0 0.0
    %229 = vmatpush1.msra.mxu0 0.0
    %230 = vmatprep.subr.mxu0 0.0
    %231 = vmatpush1.msra.mxu0 0.0
    %232 = vmatprep.subr.mxu0 0.0
    %233 = vmatpush1.msra.mxu0 0.0
    %234 = vmatprep.subr.mxu0 0.0
    %235 = vmatpush1.msra.mxu0 0.0
    %236 = vmatprep.subr.mxu0 0.0
    %237 = vmatpush1.msra.mxu0 0.0
    %238 = vmatprep.subr.mxu0 0.0
    %239 = vmatpush1.msra.mxu0 0.0
    %240 = vmatprep.subr.mxu0 0.0
    %241 = vmatpush1.msra.mxu0 0.0
    %242 = vmatprep.subr.mxu0 0.0
    %243 = vmatpush1.msra.mxu0 0.0
    %244 = vmatprep.subr.mxu0 0.0
    %245 = vmatpush1.msra.mxu0 0.0
    %246 = vmatprep.subr.mxu0 0.0
    %247 = vmatpush1.msra.mxu0 0.0
    %248 = vmatprep.subr.mxu0 0.0
    %249 = vmatpush1.msra.mxu0 0.0
    %250 = vmatprep.subr.mxu0 0.0
    %251 = vmatpush1.msra.mxu0 0.0
    %252 = vmatprep.subr.mxu0 0.0
    %253 = vmatpush1.msra.mxu0 0.0
    %254 = vmatprep.subr.mxu0 0.0
    %255 = vmatpush1.msra.mxu0 0.0
    %256 = vmatprep.subr.mxu0 0.0
    %257 = vmatpush1.msra.mxu0 0.0
    %258 = vmatprep.mubr.f32.mxu0 0.0
    %259 = vmatmul.mubr.f32.gmra.mrb[0].mxu0 %v127
    %v260 = vpop.f32.mrb[0].mxu0
    %v261 = vadd.f32 0.0, %v260
    %v262 = vpop.f32.mrb[0].mxu0
    %v263 = vadd.f32 0.0, %v262
    %264 = vdwg.mxu0
    %265 = vmatprep.subr.mxu0 %v133
    %266 = vmatpush1.msra.mxu0 %v132
    %267 = vmatprep.subr.mxu0 %v137
    %268 = vmatpush1.msra.mxu0 %v136
    %269 = vmatprep.subr.mxu0 %v141
    %270 = vmatpush1.msra.mxu0 %v140
    %271 = vmatprep.subr.mxu0 %v145
    %272 = vmatpush1.msra.mxu0 %v144
    %273 = vmatprep.subr.mxu0 %v149
    %274 = vmatpush1.msra.mxu0 %v148
    %275 = vmatprep.subr.mxu0 %v153
    %276 = vmatpush1.msra.mxu0 %v152
    %277 = vmatprep.subr.mxu0 %v157
    %278 = vmatpush1.msra.mxu0 %v156
    %279 = vmatprep.subr.mxu0 %v161
    %280 = vmatpush1.msra.mxu0 %v160
    %281 = vmatprep.subr.mxu0 %v165
    %282 = vmatpush1.msra.mxu0 %v164
    %283 = vmatprep.subr.mxu0 %v169
    %284 = vmatpush1.msra.mxu0 %v168
    %285 = vmatprep.subr.mxu0 %v173
    %286 = vmatpush1.msra.mxu0 %v172
    %287 = vmatprep.subr.mxu0 %v177
    %288 = vmatpush1.msra.mxu0 %v176
    %289 = vmatprep.subr.mxu0 %v181
    %290 = vmatpush1.msra.mxu0 %v180
    %291 = vmatprep.subr.mxu0 %v185
    %292 = vmatpush1.msra.mxu0 %v184
    %293 = vmatprep.subr.mxu0 %v189
    %294 = vmatpush1.msra.mxu0 %v188
    %295 = vmatprep.subr.mxu0 %v193
    %296 = vmatpush1.msra.mxu0 %v192
    %297 = vmatprep.subr.mxu0 0.0
    %298 = vmatpush1.msra.mxu0 0.0
    %299 = vmatprep.subr.mxu0 0.0
    %300 = vmatpush1.msra.mxu0 0.0
    %301 = vmatprep.subr.mxu0 0.0
    %302 = vmatpush1.msra.mxu0 0.0
    %303 = vmatprep.subr.mxu0 0.0
    %304 = vmatpush1.msra.mxu0 0.0
    %305 = vmatprep.subr.mxu0 0.0
    %306 = vmatpush1.msra.mxu0 0.0
    %307 = vmatprep.subr.mxu0 0.0
    %308 = vmatpush1.msra.mxu0 0.0
    %309 = vmatprep.subr.mxu0 0.0
    %310 = vmatpush1.msra.mxu0 0.0
    %311 = vmatprep.subr.mxu0 0.0
    %312 = vmatpush1.msra.mxu0 0.0
    %313 = vmatprep.subr.mxu0 0.0
    %314 = vmatpush1.msra.mxu0 0.0
    %315 = vmatprep.subr.mxu0 0.0
    %316 = vmatpush1.msra.mxu0 0.0
    %317 = vmatprep.subr.mxu0 0.0
    %318 = vmatpush1.msra.mxu0 0.0
    %319 = vmatprep.subr.mxu0 0.0
    %320 = vmatpush1.msra.mxu0 0.0
    %321 = vmatprep.subr.mxu0 0.0
    %322 = vmatpush1.msra.mxu0 0.0
    %323 = vmatprep.subr.mxu0 0.0
    %324 = vmatpush1.msra.mxu0 0.0
    %325 = vmatprep.subr.mxu0 0.0
    %326 = vmatpush1.msra.mxu0 0.0
    %327 = vmatprep.subr.mxu0 0.0
    %328 = vmatpush1.msra.mxu0 0.0
    %329 = vmatprep.mubr.f32.mxu0 0.0
    %330 = vmatmul.mubr.f32.gmra.mrb[0].mxu0 %v127
    %v331 = vpop.f32.mrb[0].mxu0
    %v332 = vadd.f32 0.0, %v331
    %v333 = vpop.f32.mrb[0].mxu0
    %v334 = vadd.f32 0.0, %v333
    %335 = vdwg.mxu0
    %v336 = vld [vmem:[%s4] sm:$0xff]
    %v337 = vld [vmem:[%s4 + $0x8] sm:$0xff]
    %v338 = vld [vmem:[%s4 + $0x10] sm:$0xff]
    %v339 = vld [vmem:[%s4 + $0x18] sm:$0xff]
    %v340 = vstv %s45
    %v341 = vmul.f32 %v340, %v336
    %v342 = vmul.f32 %v340, %v337
    %v343 = vmul.f32 %v340, %v338
    %v344 = vmul.f32 %v340, %v339
    %v345 = vadd.f32 %v341, %v261
    %v346 = vadd.f32 %v342, %v263
    %v347 = vadd.f32 %v343, %v332
    %v348 = vadd.f32 %v344, %v334
    %v349 = vadd.f32 %v345, %v346
    %v350 = vadd.f32 %v349, %v347
    %v351 = vadd.f32 %v350, %v348
    %352 = vadd.xlane.f32.xlu0 %v351
    %v353 = vpop.xlane.xlu0 %352
    %v354 = vmul.f32 %v345, %v345
    %v355 = vmul.f32 %v346, %v346
    %v356 = vmul.f32 %v347, %v347
    %v357 = vmul.f32 %v348, %v348
    %v358 = vadd.f32 %v354, %v355
    %v359 = vadd.f32 %v358, %v356
    %v360 = vadd.f32 %v359, %v357
    %361 = vadd.xlane.f32.xlu0 %v360
    %v362 = vpop.xlane.xlu0 %361
    %v363 = vmul.f32 %v353, 0.001953125
    %v364 = vmul.f32 %v362, 0.001953125
    %v365 = vmul.f32 %v363, %v363
    %v366 = vsub.f32 %v364, %v365
    %v367 = vld [vmem:[%s6] sm:$0xff]
    %v368 = vadd.f32 %v366, 1e-05
    %v369 = vrsqrt.pop %v368
    %v370 = vmul.f32 %v367, %v369
    %v371 = vsub.f32 %v345, %v363
    %v372 = vsub.f32 %v346, %v363
    %v373 = vsub.f32 %v347, %v363
    %v374 = vsub.f32 %v348, %v363
    %376 = vset.pattern.permute.xlu0 0
    %377 = vperm.xlu0 %376, %v370
    %v378 = vpop.permute.xlu0 %377
    %v380 = vmul.f32 %v371, %v378
    %v381 = vmul.f32 %v372, %v378
    %v382 = vmul.f32 %v373, %v378
    %v383 = vmul.f32 %v374, %v378
    %v384 = vld [vmem:[%s7] sm:$0xff]
    %386 = vset.pattern.permute.xlu0 0
    %387 = vperm.xlu0 %386, %v384
    %v388 = vpop.permute.xlu0 %387
    %v390 = vadd.f32 %v380, %v388
    %v391 = vadd.f32 %v381, %v388
    %v392 = vadd.f32 %v382, %v388
    %v393 = vadd.f32 %v383, %v388
    %v394 = vmax.f32 %v390, 0.0
    %v395 = vmax.f32 %v391, 0.0
    %v396 = vmax.f32 %v392, 0.0
    %v397 = vmax.f32 %v393, 0.0
    %v398 = vadd.f32 %v341, %v394
    %v399 = vadd.f32 %v342, %v395
    %v400 = vadd.f32 %v343, %v396
    %v401 = vadd.f32 %v344, %v397
    %v402 = vstv %s44
    %v403 = vmul.f32 %v402, %v398
    %v404 = vmul.f32 %v402, %v399
    %v405 = vmul.f32 %v402, %v400
    %v406 = vmul.f32 %v402, %v401
    %407 = vst [vmem:[%s9] sm:$0xff] %v403
    %408 = vst [vmem:[%s9 + $0x8] sm:$0xff] %v404
    %409 = vst [vmem:[%s9 + $0x10] sm:$0xff] %v405
    %410 = vst [vmem:[%s9 + $0x18] sm:$0xff] %v406
    %v411 = vld [vmem:[%s4] sm:$0xff]
    %v412 = vld [vmem:[%s4 + $0x8] sm:$0xff]
    %v413 = vld [vmem:[%s4 + $0x10] sm:$0xff]
    %v414 = vld [vmem:[%s4 + $0x18] sm:$0xff]
    %v415 = vmul.f32 %v403, 1.5
    %v416 = vmul.f32 %v404, 1.5
    %v417 = vmul.f32 %v405, 1.5
    %v418 = vmul.f32 %v406, 1.5
    %v419 = vsub.f32 %v411, %v415
    %v420 = vsub.f32 %v412, %v416
    %v421 = vsub.f32 %v413, %v417
    %v422 = vsub.f32 %v414, %v418
    %v423 = vld [vmem:[%s5] sm:$0xff]
    %v424 = vld [vmem:[%s5 + $0x8] sm:$0xff]
    %v425 = vld [vmem:[%s5 + $0x10] sm:$0xff]
    %v426 = vld [vmem:[%s5 + $0x18] sm:$0xff]
    %v427 = vmul.f32 %v423, 0.5
    %v428 = vmul.f32 %v424, 0.5
    %v429 = vmul.f32 %v425, 0.5
    %v430 = vmul.f32 %v426, 0.5
    %v431 = vadd.f32 %v419, %v427
    %v432 = vadd.f32 %v420, %v428
    %v433 = vadd.f32 %v421, %v429
    %v434 = vadd.f32 %v422, %v430
    %435 = vst [vmem:[%s8] sm:$0xff] %v431
    %436 = vst [vmem:[%s8 + $0x8] sm:$0xff] %v432
    %437 = vst [vmem:[%s8 + $0x10] sm:$0xff] %v433
    %438 = vst [vmem:[%s8 + $0x18] sm:$0xff] %v434
    // Predicated region
    $region38: #{_c_br_forward_impl.1} parent=1 // pred_check
      _
    $region39: #{_c_br_forward_impl.1} parent=1 // pred_check_branch
      %440 = sbr.rel (0) target = $region41
    $region40: #{_c_br_forward_impl.1} parent=1 // pred_region
      _
    $region41: #{_c_br_forward_impl.1} parent=1 // pred_fallthru
      _
    // Predicated region
    $region42: #{_c_br_forward_impl.1} parent=1 // pred_check
      _
    $region43: #{_c_br_forward_impl.1} parent=1 // pred_check_branch
      %442 = sbr.rel (0) target = $region45
    $region44: #{_c_br_forward_impl.1} parent=1 // pred_region
      _
    $region45: #{_c_br_forward_impl.1} parent=1 // pred_fallthru
      _
    // Predicated region
    $region46: #{_c_br_forward_impl.1} parent=1 // pred_check
      _
    $region47: #{_c_br_forward_impl.1} parent=1 // pred_check_branch
      %444 = sbr.rel (0) target = $region49
    $region48: #{_c_br_forward_impl.1} parent=1 // pred_region
      _
    $region49: #{_c_br_forward_impl.1} parent=1 // pred_fallthru
      _
    // Predicated region
    $region50: #{_c_br_forward_impl.1} parent=1 // pred_check
      _
    $region51: #{_c_br_forward_impl.1} parent=1 // pred_check_branch
      %446 = sbr.rel (0) target = $region53
    $region52: #{_c_br_forward_impl.1} parent=1 // pred_region
      _
    $region53: #{_c_br_forward_impl.1} parent=1 // pred_fallthru
      _
    %447 = vsyncpa [#allocation3], 1

</llo_original>
